<compile_context>
chip_gen: v5e
topology: v5e:2x2
jax: 0.10.0
libtpu: 0.0.40
codegen_flags: <defaults>
</compile_context>

<pallas_src>
import jax
import jax.numpy as jnp
from jax.experimental import pallas as pl
from jax.experimental.pallas import tpu as pltpu


def _se_kernel(x_ref, w1_ref, b1_ref, w2_ref, b2_ref, o_ref):
    # x_ref: (TB, HW, C) block -- C on lanes (lane-dense), HW on sublanes.
    x = x_ref[...]
    xf = x.astype(jnp.float32)

    # --- global average pool (AdaptiveAvgPool2d(1)) over HW -> (TB, C) ---
    pooled = jnp.mean(xf, axis=1)

    # --- conv1 (1x1) + ReLU:  (TB, C) @ (C, Cr) -> (TB, Cr) ---
    h = jnp.dot(pooled, w1_ref[...], preferred_element_type=jnp.float32)
    h = jnp.maximum(h + b1_ref[...], 0.0)

    # --- conv2 (1x1) + hsigmoid = relu6(x + 3) / 6:  (TB, Cr) @ (Cr, C) ---
    g = jnp.dot(h, w2_ref[...], preferred_element_type=jnp.float32)
    g = g + b2_ref[...]
    g = jnp.clip(g + 3.0, 0.0, 6.0) * (1.0 / 6.0)

    # --- scale the input: broadcast g over the HW (sublane) axis ---
    o_ref[...] = (xf * g[:, None, :]).astype(o_ref.dtype)


def _pick_batch_tile(n, hw, c, itemsize, block_budget_bytes):
    """Largest divisor of n whose (tb, HW, C) block fits the VMEM budget."""
    per_sample = hw * c * itemsize
    tb = max(1, block_budget_bytes // per_sample)
    if n > 1:
        # keep >= 2 grid steps so both v7x TensorCores get work
        tb = min(tb, max(1, n // 2))
    tb = min(tb, n)
    while n % tb != 0:      # avoid ragged last block
        tb -= 1
    return tb


def _se_module_nhwc(x_nhwc, w1, b1, w2, b2):
    """x_nhwc: (N, HW, C). Returns (N, HW, C)."""
    N, HW, C = x_nhwc.shape
    Cr = w1.shape[1]
    itemsize = jnp.dtype(x_nhwc.dtype).itemsize

    # ~8 MiB per x/out block -> <= ~32 MiB with in+out double buffering,
    # safe inside the 48 MiB scoped limit below on every generation
    # (v7x physical VMEM = 64 MiB; v5e default scope is only 16 MiB).
    tb = _pick_batch_tile(N, HW, C, itemsize, block_budget_bytes=8 * 1024 * 1024)
    grid = (N // tb,)

    return pl.pallas_call(
        _se_kernel,
        out_shape=jax.ShapeDtypeStruct((N, HW, C), x_nhwc.dtype),
        grid=grid,
        in_specs=[
            pl.BlockSpec((tb, HW, C), lambda n: (n, 0, 0)),   # x
            pl.BlockSpec((C, Cr), lambda n: (0, 0)),          # w1
            pl.BlockSpec((1, Cr), lambda n: (0, 0)),          # b1
            pl.BlockSpec((Cr, C), lambda n: (0, 0)),          # w2
            pl.BlockSpec((1, C), lambda n: (0, 0)),           # b2
        ],
        out_specs=pl.BlockSpec((tb, HW, C), lambda n: (n, 0, 0)),
        input_output_aliases={0: 0},   # x is dead after the scaled write
        compiler_params=pltpu.CompilerParams(
            dimension_semantics=("parallel",),
            vmem_limit_bytes=48 * 1024 * 1024,
        ),
    )(x_nhwc, w1, b1, w2, b2)


@jax.jit
def se_module(x_nchw, w1, b1, w2, b2):
    """SEModule forward. x_nchw: (N, C, H, W). Returns same shape/dtype."""
    N, C, H, W = x_nchw.shape
    # Layout plumbing: present a lane-dense (N, HW, C) slab to the kernel.
    # (In a real NHWC-native network this transpose disappears.)
    x_nhwc = jnp.transpose(x_nchw, (0, 2, 3, 1)).reshape(N, H * W, C)
    out = _se_module_nhwc(x_nhwc, w1, b1, w2, b2)
    return jnp.transpose(out.reshape(N, H, W, C), (0, 3, 1, 2))


def se_reference(x_nchw, w1, b1, w2, b2):
    """Plain-JAX reference matching the PyTorch forward."""
    pooled = jnp.mean(x_nchw, axis=(2, 3))                     # (N, C)
    h = jnp.maximum(pooled @ w1 + b1[0], 0.0)                  # (N, Cr)
    g = h @ w2 + b2[0]                                         # (N, C)
    g = jnp.clip(g + 3.0, 0.0, 6.0) / 6.0
    return x_nchw * g[:, :, None, None]


if __name__ == "__main__":
    # Small shapes consistent with the module: batch=2, channels=4, spatial=16.
    N, C, H, W = 2, 4, 16, 16
    reduction = 4
    Cr = C // reduction

    key = jax.random.PRNGKey(0)
    kx, k1, kb1, k2, kb2 = jax.random.split(key, 5)

    x = jax.random.normal(kx, (N, C, H, W), dtype=jnp.float32)

    # conv weights (out, in, 1, 1) -> dense, then pre-transpose for the kernel.
    conv1_w = jax.random.normal(k1, (Cr, C), dtype=jnp.float32) * 0.5
    conv1_b = jax.random.normal(kb1, (Cr,), dtype=jnp.float32) * 0.1
    conv2_w = jax.random.normal(k2, (C, Cr), dtype=jnp.float32) * 0.5
    conv2_b = jax.random.normal(kb2, (C,), dtype=jnp.float32) * 0.1

    w1 = conv1_w.T              # (C, Cr)
    b1 = conv1_b[None, :]       # (1, Cr)
    w2 = conv2_w.T              # (Cr, C)
    b2 = conv2_b[None, :]       # (1, C)

    out = se_module(x, w1, b1, w2, b2)
    out = jax.block_until_ready(out)

    ref = se_reference(x, w1, b1, w2, b2)
    assert out.shape == (N, C, H, W)
    assert jnp.allclose(out, ref, atol=1e-5, rtol=1e-5), "mismatch vs reference"

    print("KERNEL_OK")
</pallas_src>

<mosaic_0001>
module attributes {stable_mosaic.version = 11 : i64} {
  func.func @_se_kernel(%arg0: i32, %arg1: memref<1x256x4xf32, #tpu.memory_space<vmem>>, %arg2: memref<4x1xf32, #tpu.memory_space<vmem>>, %arg3: memref<1x1xf32, #tpu.memory_space<vmem>>, %arg4: memref<1x4xf32, #tpu.memory_space<vmem>>, %arg5: memref<1x4xf32, #tpu.memory_space<vmem>>, %arg6: memref<1x256x4xf32, #tpu.memory_space<vmem>>) attributes {dimension_semantics = [#tpu.dimension_semantics<parallel>], iteration_bounds = array<i64: 2>, scalar_prefetch = 0 : i64, scratch_operands = 0 : i64, tpu.core_type = #tpu.core_type<tc>, window_params = [{transform_indices = @transform_0, window_bounds = array<i64: 1, 256, 4>}, {pipeline_mode = #tpu.pipeline_mode<synchronous>, transform_indices = @transform_1, window_bounds = array<i64: 4, 1>}, {pipeline_mode = #tpu.pipeline_mode<synchronous>, transform_indices = @transform_2, window_bounds = array<i64: 1, 1>}, {pipeline_mode = #tpu.pipeline_mode<synchronous>, transform_indices = @transform_3, window_bounds = array<i64: 1, 4>}, {pipeline_mode = #tpu.pipeline_mode<synchronous>, transform_indices = @transform_4, window_bounds = array<i64: 1, 4>}, {transform_indices = @transform_5, window_bounds = array<i64: 1, 256, 4>}]} {
    %c0 = arith.constant 0 : index
    %c0_0 = arith.constant 0 : index
    %c0_1 = arith.constant 0 : index
    %0 = vector.load %arg1[%c0, %c0_0, %c0_1] : memref<1x256x4xf32, #tpu.memory_space<vmem>>, vector<1x256x4xf32>
    %cst = arith.constant dense<0.000000e+00> : vector<1x4xf32>
    %1 = vector.multi_reduction <add>, %0, %cst [1] : vector<1x256x4xf32> to vector<1x4xf32>
    %cst_2 = arith.constant 2.560000e+02 : f32
    %2 = vector.broadcast %cst_2 : f32 to vector<1x4xf32>
    %3 = arith.divf %1, %2 : vector<1x4xf32>
    %c0_3 = arith.constant 0 : index
    %c0_4 = arith.constant 0 : index
    %4 = vector.load %arg2[%c0_3, %c0_4] : memref<4x1xf32, #tpu.memory_space<vmem>>, vector<4x1xf32>
    %cst_5 = arith.constant dense<0.000000e+00> : vector<1x1xf32>
    %5 = tpu.matmul %3, %4, %cst_5 {dimension_numbers = #tpu.dot_dimension_numbers<[1], [0], [0], [1], [0, 0, 1, 1], [], []>} : vector<1x4xf32>, vector<4x1xf32>, vector<1x1xf32> -> vector<1x1xf32>
    %c0_6 = arith.constant 0 : index
    %c0_7 = arith.constant 0 : index
    %6 = vector.load %arg3[%c0_6, %c0_7] : memref<1x1xf32, #tpu.memory_space<vmem>>, vector<1x1xf32>
    %7 = arith.addf %5, %6 : vector<1x1xf32>
    %cst_8 = arith.constant 0.000000e+00 : f32
    %8 = vector.broadcast %cst_8 : f32 to vector<1x1xf32>
    %9 = arith.maximumf %7, %8 : vector<1x1xf32>
    %c0_9 = arith.constant 0 : index
    %c0_10 = arith.constant 0 : index
    %10 = vector.load %arg4[%c0_9, %c0_10] : memref<1x4xf32, #tpu.memory_space<vmem>>, vector<1x4xf32>
    %cst_11 = arith.constant dense<0.000000e+00> : vector<1x4xf32>
    %11 = tpu.matmul %9, %10, %cst_11 {dimension_numbers = #tpu.dot_dimension_numbers<[1], [0], [0], [1], [0, 0, 1, 1], [], []>} : vector<1x1xf32>, vector<1x4xf32>, vector<1x4xf32> -> vector<1x4xf32>
    %c0_12 = arith.constant 0 : index
    %c0_13 = arith.constant 0 : index
    %12 = vector.load %arg5[%c0_12, %c0_13] : memref<1x4xf32, #tpu.memory_space<vmem>>, vector<1x4xf32>
    %13 = arith.addf %11, %12 : vector<1x4xf32>
    %cst_14 = arith.constant 3.000000e+00 : f32
    %14 = vector.broadcast %cst_14 : f32 to vector<1x4xf32>
    %15 = arith.addf %13, %14 : vector<1x4xf32>
    %cst_15 = arith.constant 0.000000e+00 : f32
    %cst_16 = arith.constant 6.000000e+00 : f32
    %16 = vector.broadcast %cst_15 : f32 to vector<1x4xf32>
    %17 = arith.maximumf %16, %15 : vector<1x4xf32>
    %18 = vector.broadcast %cst_16 : f32 to vector<1x4xf32>
    %19 = arith.minimumf %18, %17 : vector<1x4xf32>
    %cst_17 = arith.constant 0.166666672 : f32
    %20 = vector.broadcast %cst_17 : f32 to vector<1x4xf32>
    %21 = arith.mulf %19, %20 : vector<1x4xf32>
    %22 = vector.shape_cast %21 : vector<1x4xf32> to vector<1x1x4xf32>
    %23 = vector.broadcast %22 : vector<1x1x4xf32> to vector<1x256x4xf32>
    %24 = arith.mulf %0, %23 : vector<1x256x4xf32>
    %c0_18 = arith.constant 0 : index
    %c0_19 = arith.constant 0 : index
    %c0_20 = arith.constant 0 : index
    %25 = vector.load %arg6[%c0_18, %c0_19, %c0_20] : memref<1x256x4xf32, #tpu.memory_space<vmem>>, vector<1x256x4xf32>
    tpu.vector_store %arg6[%c0_18, %c0_19, %c0_20], %24 {strides = array<i32>} : memref<1x256x4xf32, #tpu.memory_space<vmem>>, vector<1x256x4xf32>,
    return
  }
  func.func @transform_0(%arg0: i32) -> (i32, i32, i32) {
    %c0_i32 = arith.constant 0 : i32
    %c0_i32_0 = arith.constant 0 : i32
    %c0_i32_1 = arith.constant 0 : i32
    return %arg0, %c0_i32, %c0_i32_0 : i32, i32, i32
  }
  func.func @transform_1(%arg0: i32) -> (i32, i32) {
    %c0_i32 = arith.constant 0 : i32
    %c0_i32_0 = arith.constant 0 : i32
    %c0_i32_1 = arith.constant 0 : i32
    return %c0_i32, %c0_i32_0 : i32, i32
  }
  func.func @transform_2(%arg0: i32) -> (i32, i32) {
    %c0_i32 = arith.constant 0 : i32
    %c0_i32_0 = arith.constant 0 : i32
    %c0_i32_1 = arith.constant 0 : i32
    return %c0_i32, %c0_i32_0 : i32, i32
  }
  func.func @transform_3(%arg0: i32) -> (i32, i32) {
    %c0_i32 = arith.constant 0 : i32
    %c0_i32_0 = arith.constant 0 : i32
    %c0_i32_1 = arith.constant 0 : i32
    return %c0_i32, %c0_i32_0 : i32, i32
  }
  func.func @transform_4(%arg0: i32) -> (i32, i32) {
    %c0_i32 = arith.constant 0 : i32
    %c0_i32_0 = arith.constant 0 : i32
    %c0_i32_1 = arith.constant 0 : i32
    return %c0_i32, %c0_i32_0 : i32, i32
  }
  func.func @transform_5(%arg0: i32) -> (i32, i32, i32) {
    %c0_i32 = arith.constant 0 : i32
    %c0_i32_0 = arith.constant 0 : i32
    %c0_i32_1 = arith.constant 0 : i32
    return %arg0, %c0_i32, %c0_i32_0 : i32, i32, i32
  }
}

</mosaic_0001>

<llo_original>
// kernel: se_module.1
$region0: #{se_module.1}
  #allocation0 [shape = 'u32[]', space=smem, size = 0x4, offset = 0x4, fixed_abs, tag = 'smem constant byte address 0x4 - core index']
  #allocation1 [shape = 'u32[72,128]{1,0:T(1,128)}', space=vmem, size = 0x9000, scoped, tag = 'internal scratch']
  #allocation2 [shape = 'f32[1,1]{1,0:T(1,128)S(1)}', space=vmem, size = 0x200, scoped, tag = 'scoped memory for se_module.1']
  %s0 = inlined_call_operand.vmem [shape: f32[2,256,4], index: 0, kind: input, shape index: {}, may-alias: {0,5}]
  %s1 = inlined_call_operand.vmem [shape: f32[4,1], index: 1, kind: input, shape index: {}]
  %s2 = inlined_call_operand.<no memory space> [shape: f32[1,1], index: 2, kind: input, shape index: {}]
  %s3 = inlined_call_operand.vmem [shape: f32[1,4], index: 3, kind: input, shape index: {}]
  %s4 = inlined_call_operand.vmem [shape: f32[1,4], index: 4, kind: input, shape index: {}]
  %s5 = inlined_call_operand.vmem [shape: f32[2,256,4], index: 5, kind: output, shape index: {}, may-alias: {0,5}]
  %s6 = sld [smem:[#allocation0]]
  $region53: #{se_module.1} parent=0
    _
  %s8 = ssub.s32 1, %s6
  %s9 = scalar_select 0, %s8, %s6
  %v10 = vstv %s2
  %11 = vst [vmem:[#allocation2] sm:$0x1] %v10
  loop: start=0, step=1, limit=4
  $region2: #{se_module.1} parent=0 // loop_pre_header
    _
  $region3: #{se_module.1} parent=0 // loop_header
    %s13 = sphi 0, %s17
    %p14 = scmp.ge.s32.totalorder %s13, 4
    %s23 = sphi 0, %s25
    %s26 = sphi 0, %s23
    %s27 = sphi 0, %s26
    %s43 = sphi 0, %s27
    %s47 = sphi 0, %s47
    %s49 = sphi 0, %s47
    %s50 = sphi 0, %s49
    %s64 = sphi 0, %s50
    %s68 = sphi 0, %s68
    %s70 = sphi 0, %s68
    %s71 = sphi 0, %s70
    %s85 = sphi 0, %s71
    %s89 = sphi 0, %s89
    %s91 = sphi 0, %s89
    %s92 = sphi 0, %s91
    %s106 = sphi 0, %s92
    %s110 = sphi 0, %s110
    %s112 = sphi 0, %s110
    %s113 = sphi 0, %s112
    %s127 = sphi 0, %s113
    %s133 = sphi 0, %s135
    %s136 = sphi 0, %s133
    %s137 = sphi 0, %s136
    %s153 = sphi 0, %s137
  $region4: #{se_module.1} parent=0 // loop_header_branch
    %16 = sbr.rel (%p14) target = $region8
  $region5: #{se_module.1} parent=0 // loop_body
    %s18 = ssub.s32 %s13, 1
    %s19 = ssub.s32 %s13, 2
    %s20 = sadd.s32 %s13, 1
    %s21 = ssub.s32 %s13, %s20
    %p22 = scmp.eq.s32.totalorder %s21, 0
    %s24 = sadd.s32 %s23, 1
    %s25 = scalar_select %p22, %s23, %s24
    %p28 = pneg %p22
    %p29 = scmp.eq.s32.totalorder %s13, 1
    %p30 = por %p28, %p29
    %p31 = scmp.ne.s32.totalorder %s23, %s26
    %p32 = scmp.eq.s32.totalorder %s13, 0
    %p33 = por %p31, %p32
    %p34 = scmp.ne.s32.totalorder %s23, %s26
    %p35 = scmp.eq.s32.totalorder %s18, 1
    %p36 = por %p34, %p35
    %p37 = scmp.ne.s32.totalorder %s26, %s27
    %p38 = scmp.eq.s32.totalorder %s18, 0
    %p39 = por %p37, %p38
    %p40 = scmp.ne.s32.totalorder %s26, %s27
    %p41 = scmp.eq.s32.totalorder %s19, 1
    %p42 = por %p40, %p41
    %p44 = scmp.ne.s32.totalorder %s27, %s43
    %p45 = scmp.eq.s32.totalorder %s19, 0
    %p46 = por %p44, %p45
    %s48 = sadd.s32 %s47, 1
    %p51 = scmp.eq.s32.totalorder %s13, 1
    %p52 = scmp.ne.s32.totalorder %s47, %s49
    %p53 = scmp.eq.s32.totalorder %s13, 0
    %p54 = por %p52, %p53
    %p55 = scmp.ne.s32.totalorder %s47, %s49
    %p56 = scmp.eq.s32.totalorder %s18, 1
    %p57 = por %p55, %p56
    %p58 = scmp.ne.s32.totalorder %s49, %s50
    %p59 = scmp.eq.s32.totalorder %s18, 0
    %p60 = por %p58, %p59
    %p61 = scmp.ne.s32.totalorder %s49, %s50
    %p62 = scmp.eq.s32.totalorder %s19, 1
    %p63 = por %p61, %p62
    %p65 = scmp.ne.s32.totalorder %s50, %s64
    %p66 = scmp.eq.s32.totalorder %s19, 0
    %p67 = por %p65, %p66
    %s69 = sadd.s32 %s68, 1
    %p72 = scmp.eq.s32.totalorder %s13, 1
    %p73 = scmp.ne.s32.totalorder %s68, %s70
    %p74 = scmp.eq.s32.totalorder %s13, 0
    %p75 = por %p73, %p74
    %p76 = scmp.ne.s32.totalorder %s68, %s70
    %p77 = scmp.eq.s32.totalorder %s18, 1
    %p78 = por %p76, %p77
    %p79 = scmp.ne.s32.totalorder %s70, %s71
    %p80 = scmp.eq.s32.totalorder %s18, 0
    %p81 = por %p79, %p80
    %p82 = scmp.ne.s32.totalorder %s70, %s71
    %p83 = scmp.eq.s32.totalorder %s19, 1
    %p84 = por %p82, %p83
    %p86 = scmp.ne.s32.totalorder %s71, %s85
    %p87 = scmp.eq.s32.totalorder %s19, 0
    %p88 = por %p86, %p87
    %s90 = sadd.s32 %s89, 1
    %p93 = scmp.eq.s32.totalorder %s13, 1
    %p94 = scmp.ne.s32.totalorder %s89, %s91
    %p95 = scmp.eq.s32.totalorder %s13, 0
    %p96 = por %p94, %p95
    %p97 = scmp.ne.s32.totalorder %s89, %s91
    %p98 = scmp.eq.s32.totalorder %s18, 1
    %p99 = por %p97, %p98
    %p100 = scmp.ne.s32.totalorder %s91, %s92
    %p101 = scmp.eq.s32.totalorder %s18, 0
    %p102 = por %p100, %p101
    %p103 = scmp.ne.s32.totalorder %s91, %s92
    %p104 = scmp.eq.s32.totalorder %s19, 1
    %p105 = por %p103, %p104
    %p107 = scmp.ne.s32.totalorder %s92, %s106
    %p108 = scmp.eq.s32.totalorder %s19, 0
    %p109 = por %p107, %p108
    %s111 = sadd.s32 %s110, 1
    %p114 = scmp.eq.s32.totalorder %s13, 1
    %p115 = scmp.ne.s32.totalorder %s110, %s112
    %p116 = scmp.eq.s32.totalorder %s13, 0
    %p117 = por %p115, %p116
    %p118 = scmp.ne.s32.totalorder %s110, %s112
    %p119 = scmp.eq.s32.totalorder %s18, 1
    %p120 = por %p118, %p119
    %p121 = scmp.ne.s32.totalorder %s112, %s113
    %p122 = scmp.eq.s32.totalorder %s18, 0
    %p123 = por %p121, %p122
    %p124 = scmp.ne.s32.totalorder %s112, %s113
    %p125 = scmp.eq.s32.totalorder %s19, 1
    %p126 = por %p124, %p125
    %p128 = scmp.ne.s32.totalorder %s113, %s127
    %p129 = scmp.eq.s32.totalorder %s19, 0
    %p130 = por %p128, %p129
    %s131 = ssub.s32 %s13, %s20
    %p132 = scmp.eq.s32.totalorder %s131, 0
    %s134 = sadd.s32 %s133, 1
    %s135 = scalar_select %p132, %s133, %s134
    %p138 = pneg %p132
    %p139 = scmp.eq.s32.totalorder %s13, 1
    %p140 = por %p138, %p139
    %p141 = scmp.ne.s32.totalorder %s133, %s136
    %p142 = scmp.eq.s32.totalorder %s13, 0
    %p143 = por %p141, %p142
    %p144 = scmp.ne.s32.totalorder %s133, %s136
    %p145 = scmp.eq.s32.totalorder %s18, 1
    %p146 = por %p144, %p145
    %p147 = scmp.ne.s32.totalorder %s136, %s137
    %p148 = scmp.eq.s32.totalorder %s18, 0
    %p149 = por %p147, %p148
    %p150 = scmp.ne.s32.totalorder %s136, %s137
    %p151 = scmp.eq.s32.totalorder %s19, 1
    %p152 = por %p150, %p151
    %p154 = scmp.ne.s32.totalorder %s137, %s153
    %p155 = scmp.eq.s32.totalorder %s19, 0
    %p156 = por %p154, %p155
    %p157 = scmp.le.s32.totalorder 1, %s13
    %p158 = scmp.lt.s32.totalorder %s13, 3
    %p159 = pnand %p157, %p158
    %p160 = pneg %p159
    // Predicated region
    $region9: #{se_module.1} parent=5 // pred_check
      _
    $region10: #{se_module.1} parent=5 // pred_check_branch
      %162 = sbr.rel (%p159) target = $region12
    $region11: #{se_module.1} parent=5 // pred_region
      %s163 = ssub.s32 %s13, 1
      // Predicated region
      $region13: #{se_module.1} parent=11 // pred_check
        %p164 = pneg %p60
      $region14: #{se_module.1} parent=11 // pred_check_branch
        %166 = sbr.rel (%p164) target = $region16
      $region15: #{se_module.1} parent=11 // pred_region
        _
      $region16: #{se_module.1} parent=11 // pred_fallthru
        _
      // Predicated region
      $region17: #{se_module.1} parent=11 // pred_check
        %p167 = pneg %p81
      $region18: #{se_module.1} parent=11 // pred_check_branch
        %169 = sbr.rel (%p167) target = $region20
      $region19: #{se_module.1} parent=11 // pred_region
        _
      $region20: #{se_module.1} parent=11 // pred_fallthru
        _
      // Predicated region
      $region21: #{se_module.1} parent=11 // pred_check
        %p170 = pneg %p102
      $region22: #{se_module.1} parent=11 // pred_check_branch
        %172 = sbr.rel (%p170) target = $region24
      $region23: #{se_module.1} parent=11 // pred_region
        _
      $region24: #{se_module.1} parent=11 // pred_fallthru
        _
      // Predicated region
      $region25: #{se_module.1} parent=11 // pred_check
        %p173 = pneg %p123
      $region26: #{se_module.1} parent=11 // pred_check_branch
        %175 = sbr.rel (%p173) target = $region28
      $region27: #{se_module.1} parent=11 // pred_region
        _
      $region28: #{se_module.1} parent=11 // pred_fallthru
        _
    $region12: #{se_module.1} parent=5 // pred_fallthru
      _
    %p176 = scmp.lt.s32.totalorder %s13, 2
    // Predicated region
    $region29: #{se_module.1} parent=5 // pred_check
      %p177 = pneg %p176
    $region30: #{se_module.1} parent=5 // pred_check_branch
      %179 = sbr.rel (%p177) target = $region32
    $region31: #{se_module.1} parent=5 // pred_region
      // Predicated region
      $region33: #{se_module.1} parent=31 // pred_check
        %p180 = pneg %p33
      $region34: #{se_module.1} parent=31 // pred_check_branch
        %182 = sbr.rel (%p180) target = $region36
      $region35: #{se_module.1} parent=31 // pred_region
        %p183 = scmp.lt.s32.totalorder %s13, 1
        %s184 = scalar_select %p183, %s13, 1
        %s185 = smul.addr %s184, 32
        %s186 = smul.addr %s185, 8
        %s187 = scalar_lea.vmem %s0, %s186
      $region36: #{se_module.1} parent=31 // pred_fallthru
        _
    $region32: #{se_module.1} parent=5 // pred_fallthru
      _
    %p188 = scmp.le.s32.totalorder 1, %s13
    %p189 = scmp.lt.s32.totalorder %s13, 3
    %p190 = pnand %p188, %p189
    %p191 = pneg %p190
    // Predicated region
    $region37: #{se_module.1} parent=5 // pred_check
      _
    $region38: #{se_module.1} parent=5 // pred_check_branch
      %193 = sbr.rel (%p190) target = $region40
    $region39: #{se_module.1} parent=5 // pred_region
      %s194 = ssub.s32 %s13, 1
      %p195 = scmp.lt.s32.totalorder %s18, 1
      %s196 = scalar_select %p195, %s18, 1
      %s197 = smul.addr %s196, 32
      %s198 = smul.addr %s197, 8
      %s199 = scalar_lea.vmem %s0, %s198
      %p200 = pneg %p39
      %p201 = pneg %p36
      %p202 = pneg %p60
      %p203 = pneg %p57
      %p204 = pneg %p81
      %p205 = pneg %p78
      %p206 = pneg %p102
      %p207 = pneg %p99
      %p208 = pneg %p123
      %p209 = pneg %p120
      %p210 = pneg %p149
      %p211 = pneg %p146
      %p212 = scmp.lt.s32.totalorder %s18, 1
      %s213 = scalar_select %p212, %s18, 1
      %s214 = smul.addr %s213, 32
      %s215 = smul.addr %s214, 8
      %s216 = scalar_lea.vmem %s5, %s215
      %p217 = scmp.lt.s32.totalorder %s18, 1
      %s218 = scalar_select %p217, %s18, 1
      %s219 = smul.addr %s218, 32
      %s220 = smul.addr %s219, 8
      %s221 = scalar_lea.vmem %s0, %s220
      %p222 = scmp.lt.s32.totalorder %s18, 1
      %s223 = scalar_select %p222, %s18, 1
      %s224 = smul.addr %s223, 32
      %s225 = smul.addr %s224, 8
      %s226 = scalar_lea.vmem %s5, %s225
      %v227 = vld [vmem:[%s221] sm:$0xff]
      %v228 = vld [vmem:[%s221 + $0x8] sm:$0xff]
      %v229 = vld [vmem:[%s221 + $0x10] sm:$0xff]
      %v230 = vld [vmem:[%s221 + $0x18] sm:$0xff]
      %v231 = vld [vmem:[%s221 + $0x20] sm:$0xff]
      %v232 = vld [vmem:[%s221 + $0x28] sm:$0xff]
      %v233 = vld [vmem:[%s221 + $0x30] sm:$0xff]
      %v234 = vld [vmem:[%s221 + $0x38] sm:$0xff]
      %v235 = vld [vmem:[%s221 + $0x40] sm:$0xff]
      %v236 = vld [vmem:[%s221 + $0x48] sm:$0xff]
      %v237 = vld [vmem:[%s221 + $0x50] sm:$0xff]
      %v238 = vld [vmem:[%s221 + $0x58] sm:$0xff]
      %v239 = vld [vmem:[%s221 + $0x60] sm:$0xff]
      %v240 = vld [vmem:[%s221 + $0x68] sm:$0xff]
      %v241 = vld [vmem:[%s221 + $0x70] sm:$0xff]
      %v242 = vld [vmem:[%s221 + $0x78] sm:$0xff]
      %v243 = vld [vmem:[%s221 + $0x80] sm:$0xff]
      %v244 = vld [vmem:[%s221 + $0x88] sm:$0xff]
      %v245 = vld [vmem:[%s221 + $0x90] sm:$0xff]
      %v246 = vld [vmem:[%s221 + $0x98] sm:$0xff]
      %v247 = vld [vmem:[%s221 + $0xa0] sm:$0xff]
      %v248 = vld [vmem:[%s221 + $0xa8] sm:$0xff]
      %v249 = vld [vmem:[%s221 + $0xb0] sm:$0xff]
      %v250 = vld [vmem:[%s221 + $0xb8] sm:$0xff]
      %v251 = vld [vmem:[%s221 + $0xc0] sm:$0xff]
      %v252 = vld [vmem:[%s221 + $0xc8] sm:$0xff]
      %v253 = vld [vmem:[%s221 + $0xd0] sm:$0xff]
      %v254 = vld [vmem:[%s221 + $0xd8] sm:$0xff]
      %v255 = vld [vmem:[%s221 + $0xe0] sm:$0xff]
      %v256 = vld [vmem:[%s221 + $0xe8] sm:$0xff]
      %v257 = vld [vmem:[%s221 + $0xf0] sm:$0xff]
      %v258 = vld [vmem:[%s221 + $0xf8] sm:$0xff]
      %vm259 = vcmask 31744
      %v260 = vsel %vm259, %v227, 0.0
      %v261 = vsel %vm259, %v228, 0.0
      %v262 = vadd.f32 %v260, %v261
      %v263 = vsel %vm259, %v229, 0.0
      %v264 = vadd.f32 %v262, %v263
      %v265 = vsel %vm259, %v230, 0.0
      %v266 = vadd.f32 %v264, %v265
      %v267 = vsel %vm259, %v231, 0.0
      %v268 = vadd.f32 %v266, %v267
      %v269 = vsel %vm259, %v232, 0.0
      %v270 = vadd.f32 %v268, %v269
      %v271 = vsel %vm259, %v233, 0.0
      %v272 = vadd.f32 %v270, %v271
      %v273 = vsel %vm259, %v234, 0.0
      %v274 = vadd.f32 %v272, %v273
      %v275 = vsel %vm259, %v235, 0.0
      %v276 = vadd.f32 %v274, %v275
      %v277 = vsel %vm259, %v236, 0.0
      %v278 = vadd.f32 %v276, %v277
      %v279 = vsel %vm259, %v237, 0.0
      %v280 = vadd.f32 %v278, %v279
      %v281 = vsel %vm259, %v238, 0.0
      %v282 = vadd.f32 %v280, %v281
      %v283 = vsel %vm259, %v239, 0.0
      %v284 = vadd.f32 %v282, %v283
      %v285 = vsel %vm259, %v240, 0.0
      %v286 = vadd.f32 %v284, %v285
      %v287 = vsel %vm259, %v241, 0.0
      %v288 = vadd.f32 %v286, %v287
      %v289 = vsel %vm259, %v242, 0.0
      %v290 = vadd.f32 %v288, %v289
      %v291 = vsel %vm259, %v243, 0.0
      %v292 = vadd.f32 %v290, %v291
      %v293 = vsel %vm259, %v244, 0.0
      %v294 = vadd.f32 %v292, %v293
      %v295 = vsel %vm259, %v245, 0.0
      %v296 = vadd.f32 %v294, %v295
      %v297 = vsel %vm259, %v246, 0.0
      %v298 = vadd.f32 %v296, %v297
      %v299 = vsel %vm259, %v247, 0.0
      %v300 = vadd.f32 %v298, %v299
      %v301 = vsel %vm259, %v248, 0.0
      %v302 = vadd.f32 %v300, %v301
      %v303 = vsel %vm259, %v249, 0.0
      %v304 = vadd.f32 %v302, %v303
      %v305 = vsel %vm259, %v250, 0.0
      %v306 = vadd.f32 %v304, %v305
      %v307 = vsel %vm259, %v251, 0.0
      %v308 = vadd.f32 %v306, %v307
      %v309 = vsel %vm259, %v252, 0.0
      %v310 = vadd.f32 %v308, %v309
      %v311 = vsel %vm259, %v253, 0.0
      %v312 = vadd.f32 %v310, %v311
      %v313 = vsel %vm259, %v254, 0.0
      %v314 = vadd.f32 %v312, %v313
      %v315 = vsel %vm259, %v255, 0.0
      %v316 = vadd.f32 %v314, %v315
      %v317 = vsel %vm259, %v256, 0.0
      %v318 = vadd.f32 %v316, %v317
      %v319 = vsel %vm259, %v257, 0.0
      %v320 = vadd.f32 %v318, %v319
      %v321 = vsel %vm259, %v258, 0.0
      %v322 = vadd.f32 %v320, %v321
      %v323 = vrot.slane %v322, 4
      %v324 = vadd.f32 %v322, %v323
      %v325 = vrot.slane %v324, 2
      %v326 = vadd.f32 %v324, %v325
      %v327 = vrot.slane %v326, 1
      %v328 = vadd.f32 %v326, %v327
      %v329 = vrcp.pop 256.0
      %v330 = vmul.f32 256.0, %v329
      %v331 = vsub.f32 1.0, %v330
      %v332 = vmul.f32 %v329, %v331
      %v333 = vadd.f32 %v329, %v332
      %vm334 = vweird.f32 %v329
      %v335 = vsel %vm334, %v329, %v333
      %v336 = vmul.f32 %v328, %v335
      %v337 = vld [vmem:[%s1] sm:$0xf]
      %v338 = vld [vmem:[#allocation2] sm:$0x1]
      %v340 = vsel %vm259, %v336, 0
      %vm342 = vcmask 1043456
      %v344 = vsel %vm342, %v337, 0
      %346 = vmatpush.msra.mxu0 0.0
      %347 = vmatpush.msra.mxu0 0.0
      %348 = vmatpush.msra.mxu0 0.0
      %349 = vmatpush.msra.mxu0 0.0
      %350 = vmatpush.msra.mxu0 0.0
      %351 = vmatpush.msra.mxu0 0.0
      %352 = vmatpush.msra.mxu0 0.0
      %353 = vmatpush.msra.mxu0 0.0
      %354 = vmatpush.msra.mxu0 0.0
      %355 = vmatpush.msra.mxu0 0.0
      %356 = vmatpush.msra.mxu0 0.0
      %357 = vmatpush.msra.mxu0 0.0
      %358 = vmatpush.msra.mxu0 0.0
      %359 = vmatpush.msra.mxu0 0.0
      %360 = vmatpush.msra.mxu0 0.0
      %361 = vmatpush.msra.mxu0 %v344
      %362 = vmatmul.f32.gmra.mxu0 %v340
      %v363 = vpop.f32.mrf.mxu0
      %v364 = vadd.f32 %v338, %v363
      %365 = vdwg.mxu0
      %v366 = vmax.f32 %v364, 0.0
      %v367 = vld [vmem:[%s3] sm:$0x1]
      %v368 = vld [vmem:[%s4] sm:$0x1]
      %vm369 = vcmask 7168
      %v371 = vsel %vm369, %v366, 0
      %vm373 = vcmask 1040384
      %v375 = vsel %vm373, %v367, 0
      %377 = vmatpush.msra.mxu0 0.0
      %378 = vmatpush.msra.mxu0 0.0
      %379 = vmatpush.msra.mxu0 0.0
      %380 = vmatpush.msra.mxu0 0.0
      %381 = vmatpush.msra.mxu0 0.0
      %382 = vmatpush.msra.mxu0 0.0
      %383 = vmatpush.msra.mxu0 0.0
      %384 = vmatpush.msra.mxu0 0.0
      %385 = vmatpush.msra.mxu0 0.0
      %386 = vmatpush.msra.mxu0 0.0
      %387 = vmatpush.msra.mxu0 0.0
      %388 = vmatpush.msra.mxu0 0.0
      %389 = vmatpush.msra.mxu0 0.0
      %390 = vmatpush.msra.mxu0 0.0
      %391 = vmatpush.msra.mxu0 0.0
      %392 = vmatpush.msra.mxu0 %v375
      %393 = vmatmul.f32.gmra.mxu0 %v371
      %v394 = vpop.f32.mrf.mxu0
      %v395 = vadd.f32 %v368, %v394
      %396 = vdwg.mxu0
      %v397 = vadd.f32 %v395, 3.0
      %v398 = vmax.f32 %v397, 0.0
      %v399 = vmin.f32 %v398, 6.0
      %v400 = vmul.f32 %v399, 0.16666667
      %v401 = vperm.slane %v400, 0
      %v402 = vmul.f32 %v227, %v401
      %v403 = vmul.f32 %v228, %v401
      %v404 = vmul.f32 %v229, %v401
      %v405 = vmul.f32 %v230, %v401
      %v406 = vmul.f32 %v231, %v401
      %v407 = vmul.f32 %v232, %v401
      %v408 = vmul.f32 %v233, %v401
      %v409 = vmul.f32 %v234, %v401
      %v410 = vmul.f32 %v235, %v401
      %v411 = vmul.f32 %v236, %v401
      %v412 = vmul.f32 %v237, %v401
      %v413 = vmul.f32 %v238, %v401
      %v414 = vmul.f32 %v239, %v401
      %v415 = vmul.f32 %v240, %v401
      %v416 = vmul.f32 %v241, %v401
      %v417 = vmul.f32 %v242, %v401
      %v418 = vmul.f32 %v243, %v401
      %v419 = vmul.f32 %v244, %v401
      %v420 = vmul.f32 %v245, %v401
      %v421 = vmul.f32 %v246, %v401
      %v422 = vmul.f32 %v247, %v401
      %v423 = vmul.f32 %v248, %v401
      %v424 = vmul.f32 %v249, %v401
      %v425 = vmul.f32 %v250, %v401
      %v426 = vmul.f32 %v251, %v401
      %v427 = vmul.f32 %v252, %v401
      %v428 = vmul.f32 %v253, %v401
      %v429 = vmul.f32 %v254, %v401
      %v430 = vmul.f32 %v255, %v401
      %v431 = vmul.f32 %v256, %v401
      %v432 = vmul.f32 %v257, %v401
      %v433 = vmul.f32 %v258, %v401
      %434 = vst.msk [vmem:[%s226] sm:$0xff] %vm259, %v402
      %435 = vst.msk [vmem:[%s226 + $0x8] sm:$0xff] %vm259, %v403
      %436 = vst.msk [vmem:[%s226 + $0x10] sm:$0xff] %vm259, %v404
      %437 = vst.msk [vmem:[%s226 + $0x18] sm:$0xff] %vm259, %v405
      %438 = vst.msk [vmem:[%s226 + $0x20] sm:$0xff] %vm259, %v406
      %439 = vst.msk [vmem:[%s226 + $0x28] sm:$0xff] %vm259, %v407
      %440 = vst.msk [vmem:[%s226 + $0x30] sm:$0xff] %vm259, %v408
      %441 = vst.msk [vmem:[%s226 + $0x38] sm:$0xff] %vm259, %v409
      %442 = vst.msk [vmem:[%s226 + $0x40] sm:$0xff] %vm259, %v410
      %443 = vst.msk [vmem:[%s226 + $0x48] sm:$0xff] %vm259, %v411
      %444 = vst.msk [vmem:[%s226 + $0x50] sm:$0xff] %vm259, %v412
      %445 = vst.msk [vmem:[%s226 + $0x58] sm:$0xff] %vm259, %v413
      %446 = vst.msk [vmem:[%s226 + $0x60] sm:$0xff] %vm259, %v414
      %447 = vst.msk [vmem:[%s226 + $0x68] sm:$0xff] %vm259, %v415
      %448 = vst.msk [vmem:[%s226 + $0x70] sm:$0xff] %vm259, %v416
      %449 = vst.msk [vmem:[%s226 + $0x78] sm:$0xff] %vm259, %v417
      %450 = vst.msk [vmem:[%s226 + $0x80] sm:$0xff] %vm259, %v418
      %451 = vst.msk [vmem:[%s226 + $0x88] sm:$0xff] %vm259, %v419
      %452 = vst.msk [vmem:[%s226 + $0x90] sm:$0xff] %vm259, %v420
      %453 = vst.msk [vmem:[%s226 + $0x98] sm:$0xff] %vm259, %v421
      %454 = vst.msk [vmem:[%s226 + $0xa0] sm:$0xff] %vm259, %v422
      %455 = vst.msk [vmem:[%s226 + $0xa8] sm:$0xff] %vm259, %v423
      %456 = vst.msk [vmem:[%s226 + $0xb0] sm:$0xff] %vm259, %v424
      %457 = vst.msk [vmem:[%s226 + $0xb8] sm:$0xff] %vm259, %v425
      %458 = vst.msk [vmem:[%s226 + $0xc0] sm:$0xff] %vm259, %v426
      %459 = vst.msk [vmem:[%s226 + $0xc8] sm:$0xff] %vm259, %v427
      %460 = vst.msk [vmem:[%s226 + $0xd0] sm:$0xff] %vm259, %v428
      %461 = vst.msk [vmem:[%s226 + $0xd8] sm:$0xff] %vm259, %v429
      %462 = vst.msk [vmem:[%s226 + $0xe0] sm:$0xff] %vm259, %v430
      %463 = vst.msk [vmem:[%s226 + $0xe8] sm:$0xff] %vm259, %v431
      %464 = vst.msk [vmem:[%s226 + $0xf0] sm:$0xff] %vm259, %v432
      %465 = vst.msk [vmem:[%s226 + $0xf8] sm:$0xff] %vm259, %v433
      %p466 = scmp.lt.s32.totalorder %s18, 1
      %s467 = scalar_select %p466, %s18, 1
      %s468 = smul.addr %s467, 32
      %s469 = smul.addr %s468, 8
      %s470 = scalar_lea.vmem %s5, %s469
      // Predicated region
      $region41: #{se_module.1} parent=39 // pred_check
        %p471 = pneg %p146
      $region42: #{se_module.1} parent=39 // pred_check_branch
        %473 = sbr.rel (%p471) target = $region44
      $region43: #{se_module.1} parent=39 // pred_region
        _
      $region44: #{se_module.1} parent=39 // pred_fallthru
        _
    $region40: #{se_module.1} parent=5 // pred_fallthru
      _
    %p474 = scmp.le.s32.totalorder 2, %s13
    // Predicated region
    $region45: #{se_module.1} parent=5 // pred_check
      %p475 = pneg %p474
    $region46: #{se_module.1} parent=5 // pred_check_branch
      %477 = sbr.rel (%p475) target = $region48
    $region47: #{se_module.1} parent=5 // pred_region
      %s478 = ssub.s32 %s13, 2
      // Predicated region
      $region49: #{se_module.1} parent=47 // pred_check
        %p479 = pneg %p152
      $region50: #{se_module.1} parent=47 // pred_check_branch
        %481 = sbr.rel (%p479) target = $region52
      $region51: #{se_module.1} parent=47 // pred_region
        %p482 = scmp.lt.s32.totalorder %s19, 1
        %s483 = scalar_select %p482, %s19, 1
        %s484 = smul.addr %s483, 32
        %s485 = smul.addr %s484, 8
        %s486 = scalar_lea.vmem %s5, %s485
      $region52: #{se_module.1} parent=47 // pred_fallthru
        _
    $region48: #{se_module.1} parent=5 // pred_fallthru
      _
  $region6: #{se_module.1} parent=0 // loop_footer
    %s17 = sadd.s32 1, %s13
  $region7: #{se_module.1} parent=0 // loop_footer_branch
    %12 = sbr.rel target = $region3
  $region8: #{se_module.1} parent=0 // loop_exit
    _

</llo_original>
